<compile_context>
chip_gen: v6e
topology: v6e:2x2x1
jax: 0.10.0
libtpu: 0.0.40
codegen_flags: <defaults>
</compile_context>

<pallas_src>
import math

import jax
import jax.numpy as jnp
from jax import lax
from jax.experimental import pallas as pl
from jax.experimental.pallas import tpu as pltpu


# ----------------------------- Pallas kernel ------------------------------ #
def pointconv_kernel(feat_ref, w1_ref, w2_ref, out_ref):
    # feat_ref: (K, Daug, tm) bf16 -- for neighbor slot k, column m holds the
    #           augmented feature [x_i ; pos_i - pos_c ; 1 ; 0-pad] of center
    #           m's k-th neighbor; the whole column is zero when the slot is
    #           invalid (so its MLP output is 0 and the ReLU+max ignores it).
    # w1_ref:   (Daug, Daug) bf16 -- W1^T with b1 folded into the ones-row plus
    #           a passthrough so the ones-row survives layer 1.
    # w2_ref:   (nOut, Daug) f32  -- W2^T with b2 folded into the ones-row.
    # out_ref:  (nOut, tm)   f32  -- per-center output, max over the K slots.
    K = feat_ref.shape[0]
    w1t = w1_ref[...]
    w2t = w2_ref[...]
    acc = None
    for k in range(K):  # static unroll; every operand is lane-dense (last dim tm)
        h = jnp.dot(w1t, feat_ref[k], preferred_element_type=jnp.float32)
        h = jnp.maximum(h, 0.0)                                  # (Daug, tm) f32
        h = jnp.dot(w2t, h, preferred_element_type=jnp.float32)  # f32 x f32, no cast
        h = jnp.maximum(h, 0.0)                                  # (nOut, tm) f32
        acc = h if acc is None else jnp.maximum(acc, h)
    out_ref[...] = acc


def pointconv_mlp_max(feat_t, w1t, w2t, *, tm):
    """feat_t: (K, Daug, M_pad) bf16. Returns transposed output (nOut, M_pad) f32."""
    K, Daug, M_pad = feat_t.shape
    nOut = w2t.shape[0]
    grid = (M_pad // tm,)
    return pl.pallas_call(
        pointconv_kernel,
        out_shape=jax.ShapeDtypeStruct((nOut, M_pad), jnp.float32),
        grid_spec=pltpu.PrefetchScalarGridSpec(
            num_scalar_prefetch=0,
            grid=grid,
            in_specs=[
                pl.BlockSpec((K, Daug, tm), lambda i: (0, 0, i)),  # features
                pl.BlockSpec((Daug, Daug), lambda i: (0, 0)),      # W1^T (+b1)
                pl.BlockSpec((nOut, Daug), lambda i: (0, 0)),      # W2^T (+b2)
            ],
            out_specs=pl.BlockSpec((nOut, tm), lambda i: (0, i)),
        ),
        compiler_params=pltpu.CompilerParams(
            dimension_semantics=("parallel",),
            vmem_limit_bytes=32 * 1024 * 1024),
    )(feat_t, w1t, w2t)


def _round_up(v, m):
    return ((v + m - 1) // m) * m


def _pick_tile(M, max_tm=2048):
    """Center tile tm (lane dim -> multiple of 128). Prefer >= 2 grid steps so
    both v7x TensorCores get work; after the lane-dense repack a tm=2048 tile
    is only ~0.5 MiB of VMEM (feat + output, double-buffered), safe on all
    generations including v7x's 64 MiB VMEM."""
    q = 128
    M_pad = _round_up(max(M, 1), q)
    if M_pad >= 2 * q:
        n_steps = max(2, -(-M_pad // max_tm))
    else:
        n_steps = 1
    tm = _round_up(-(-M_pad // n_steps), q)
    M_pad = _round_up(M_pad, tm)
    return tm, M_pad


def fuse_mlp_params(w1, b1, w2, b2):
    """Fold b1/b2 into transposed, ones-row-augmented weight matrices (f32)."""
    D = w1.shape[0]
    nOut = w2.shape[1]
    Daug = _round_up(D + 1, 8)
    w1t = jnp.zeros((Daug, Daug), jnp.float32)
    w1t = w1t.at[:D, :D].set(w1.T)
    w1t = w1t.at[:D, D].set(b1.reshape(-1))
    w1t = w1t.at[D, D].set(1.0)     # ones-row passthrough (carries b2 gate + mask)
    w2t = jnp.zeros((nOut, Daug), jnp.float32)
    w2t = w2t.at[:, :D].set(w2.T)
    w2t = w2t.at[:, D].set(b2.reshape(-1))
    return w1t, w2t, Daug


# ------------------------- JAX glue (graph building) ----------------------- #
# TODO(synk): torch_cluster.fps / radius are sequential & variable-size graph
# ops with no clean Pallas equivalent; they are implemented in plain JAX below.
# TODO(synk): fusing the neighbor gather into the kernel (scalar-prefetched nbr
# indices + manual DMA from x/pos kept in HBM via memory_space=pl.ANY) would
# remove the materialized (M, K, Daug) HBM round trip; structural follow-up.
def fps_segment(pos_seg, num_samples):
    """Farthest point sampling on one batch segment (deterministic start=0)."""
    n = pos_seg.shape[0]
    sel0 = jnp.zeros((num_samples,), jnp.int32)
    dist0 = jnp.full((n,), jnp.inf, jnp.float32)

    def body(i, carry):
        sel, dist = carry
        last = pos_seg[sel[i - 1]]
        d = jnp.sum((pos_seg - last) ** 2, axis=-1)
        dist = jnp.minimum(dist, d)
        sel = sel.at[i].set(jnp.argmax(dist).astype(jnp.int32))
        return sel, dist

    sel, _ = lax.fori_loop(1, num_samples, body, (sel0, dist0))
    return sel


def radius_gather_aug(x, pos, batch, idx, r, K, Daug):
    """For each sampled center, gather up to K nearest in-radius, same-batch
    neighbors and build ones-augmented features [x_nbr ; pos_nbr - pos_c ; 1],
    zeroed (including the ones column) for invalid slots."""
    centers = pos[idx]                                     # (M, 3)
    cbatch = batch[idx]
    d2 = jnp.sum((centers[:, None, :] - pos[None, :, :]) ** 2, axis=-1)   # (M, N)
    valid = (cbatch[:, None] == batch[None, :]) & (d2 <= r * r)
    d2m = jnp.where(valid, d2, jnp.inf)
    # TODO(synk): torch_cluster.radius keeps an arbitrary first-K in-radius
    # subset; we keep the K *nearest* (identical whenever <= K are in radius).
    _, nbr = lax.top_k(-d2m, K)                            # (M, K)
    nbr_valid = jnp.take_along_axis(valid, nbr, axis=1)    # (M, K)
    x_nbr = x[nbr]                                         # (M, K, nIn)
    rel = pos[nbr] - centers[:, None, :]                   # (M, K, 3)
    ones = jnp.ones(nbr_valid.shape + (1,), x.dtype)
    feat = jnp.concatenate([x_nbr, rel, ones], axis=-1)    # (M, K, nIn+4)
    feat = jnp.where(nbr_valid[:, :, None], feat, 0.0)
    return jnp.pad(feat, ((0, 0), (0, 0), (0, Daug - feat.shape[-1])))


def sa_module_forward(params, x, pos, batch, seg_sizes, *, ratio, r, K, max_tm=2048):
    # 1) FPS per batch segment (eval mode -> start at first point of segment).
    idx_parts, off = [], 0
    for n in seg_sizes:
        m = int(math.ceil(ratio * n))
        idx_parts.append(fps_segment(pos[off:off + n], m) + off)
        off += n
    idx = jnp.concatenate(idx_parts, axis=0)

    # 2) Bias-fused weights + ones-augmented neighborhood gather (mask folded
    #    into the ones column -> no separate mask stream needed).
    w1t, w2t, Daug = fuse_mlp_params(
        params["w1"], params["b1"], params["w2"], params["b2"])
    feat = radius_gather_aug(x, pos, batch, idx, r, K, Daug)   # (M, K, Daug) f32

    # 3) Lane-dense transposed packing: centers on lanes, features on sublanes.
    M = feat.shape[0]
    tm, M_pad = _pick_tile(M, max_tm=max_tm)
    feat = jnp.pad(feat, ((0, M_pad - M), (0, 0), (0, 0)))
    feat_t = jnp.transpose(feat, (1, 2, 0)).astype(jnp.bfloat16)  # (K, Daug, M_pad)

    out_t = pointconv_mlp_max(feat_t, w1t.astype(jnp.bfloat16), w2t, tm=tm)
    out = out_t[:, :M].T                                   # (M, nOut)

    return out, pos[idx], batch[idx], idx


# ---------------------------------- demo ----------------------------------- #
if __name__ == "__main__":
    nIn, nOut = 4, 32
    ratio, radius_r, K = 0.5, 0.3, 8
    seg_sizes = (32, 32)                 # two graphs in the batch
    N = sum(seg_sizes)
    D = nIn + 3                          # PointConv MLP input dim

    key = jax.random.PRNGKey(0)
    kx, kp, k1, k2, k3, k4 = jax.random.split(key, 6)

    x = jax.random.normal(kx, (N, nIn), jnp.float32)
    pos = jax.random.uniform(kp, (N, 3), jnp.float32)
    batch = jnp.concatenate(
        [jnp.full((n,), i, jnp.int32) for i, n in enumerate(seg_sizes)])

    # Deterministic MLP([D, D, nOut]) parameters.
    params = {
        "w1": jax.random.normal(k1, (D, D), jnp.float32) * 0.2,
        "b1": jax.random.normal(k2, (1, D), jnp.float32) * 0.1,
        "w2": jax.random.normal(k3, (D, nOut), jnp.float32) * 0.2,
        "b2": jax.random.normal(k4, (1, nOut), jnp.float32) * 0.1,
    }

    x_out, pos_out, batch_out, idx = sa_module_forward(
        params, x, pos, batch, seg_sizes, ratio=ratio, r=radius_r, K=K)
    jax.block_until_ready((x_out, pos_out, batch_out, idx))

    assert x_out.shape == (32, nOut) and pos_out.shape == (32, 3)
    assert batch_out.shape == (32,) and idx.shape == (32,)
    assert bool(jnp.all(jnp.isfinite(x_out)))

    # Pure-JAX f32 reference of the same math (layout / bias-fusion sanity
    # check; loose tolerance covers the bf16 streaming of feat and W1).
    w1t_f32, w2t_f32, Daug = fuse_mlp_params(
        params["w1"], params["b1"], params["w2"], params["b2"])
    feat_ref = radius_gather_aug(x, pos, batch, idx, radius_r, K, Daug)
    h = jnp.maximum(jnp.einsum("mkd,cd->mkc", feat_ref, w1t_f32), 0.0)
    h = jnp.maximum(jnp.einsum("mkd,cd->mkc", h, w2t_f32), 0.0)
    ref = jnp.max(h, axis=1)
    assert bool(jnp.allclose(x_out, ref, rtol=1e-1, atol=1e-1))

    print("KERNEL_OK")
</pallas_src>

<mosaic_0001>
module attributes {stable_mosaic.version = 11 : i64} {
  func.func @pointconv_kernel(%arg0: i32, %arg1: memref<8x8x128xbf16, #tpu.memory_space<vmem>>, %arg2: memref<8x8xbf16, #tpu.memory_space<vmem>>, %arg3: memref<32x8xf32, #tpu.memory_space<vmem>>, %arg4: memref<32x128xf32, #tpu.memory_space<vmem>>) attributes {dimension_semantics = [#tpu.dimension_semantics<parallel>], iteration_bounds = array<i64: 1>, scalar_prefetch = 0 : i64, scratch_operands = 0 : i64, tpu.core_type = #tpu.core_type<tc>, window_params = [{transform_indices = @transform_0, window_bounds = array<i64: 8, 8, 128>}, {pipeline_mode = #tpu.pipeline_mode<synchronous>, transform_indices = @transform_1, window_bounds = array<i64: 8, 8>}, {pipeline_mode = #tpu.pipeline_mode<synchronous>, transform_indices = @transform_2, window_bounds = array<i64: 32, 8>}, {transform_indices = @transform_3, window_bounds = array<i64: 32, 128>}]} {
    %c0 = arith.constant 0 : index
    %c0_0 = arith.constant 0 : index
    %0 = vector.load %arg2[%c0, %c0_0] : memref<8x8xbf16, #tpu.memory_space<vmem>>, vector<8x8xbf16>
    %c0_1 = arith.constant 0 : index
    %c0_2 = arith.constant 0 : index
    %1 = vector.load %arg3[%c0_1, %c0_2] : memref<32x8xf32, #tpu.memory_space<vmem>>, vector<32x8xf32>
    %c0_3 = arith.constant 0 : index
    %c0_4 = arith.constant 0 : index
    %c0_5 = arith.constant 0 : index
    %2 = vector.load %arg1[%c0_3, %c0_4, %c0_5] : memref<8x8x128xbf16, #tpu.memory_space<vmem>>, vector<1x8x128xbf16>
    %3 = vector.shape_cast %2 : vector<1x8x128xbf16> to vector<8x128xbf16>
    %cst = arith.constant dense<0.000000e+00> : vector<8x128xf32>
    %4 = tpu.matmul %0, %3, %cst {dimension_numbers = #tpu.dot_dimension_numbers<[1], [0], [0], [1], [0, 0, 1, 1], [], []>} : vector<8x8xbf16>, vector<8x128xbf16>, vector<8x128xf32> -> vector<8x128xf32>
    %cst_6 = arith.constant 0.000000e+00 : f32
    %5 = vector.broadcast %cst_6 : f32 to vector<8x128xf32>
    %6 = arith.maximumf %4, %5 : vector<8x128xf32>
    %cst_7 = arith.constant dense<0.000000e+00> : vector<32x128xf32>
    %7 = tpu.matmul %1, %6, %cst_7 {dimension_numbers = #tpu.dot_dimension_numbers<[1], [0], [0], [1], [0, 0, 1, 1], [], []>} : vector<32x8xf32>, vector<8x128xf32>, vector<32x128xf32> -> vector<32x128xf32>
    %cst_8 = arith.constant 0.000000e+00 : f32
    %8 = vector.broadcast %cst_8 : f32 to vector<32x128xf32>
    %9 = arith.maximumf %7, %8 : vector<32x128xf32>
    %c1 = arith.constant 1 : index
    %c0_9 = arith.constant 0 : index
    %c0_10 = arith.constant 0 : index
    %10 = vector.load %arg1[%c1, %c0_9, %c0_10] : memref<8x8x128xbf16, #tpu.memory_space<vmem>>, vector<1x8x128xbf16>
    %11 = vector.shape_cast %10 : vector<1x8x128xbf16> to vector<8x128xbf16>
    %cst_11 = arith.constant dense<0.000000e+00> : vector<8x128xf32>
    %12 = tpu.matmul %0, %11, %cst_11 {dimension_numbers = #tpu.dot_dimension_numbers<[1], [0], [0], [1], [0, 0, 1, 1], [], []>} : vector<8x8xbf16>, vector<8x128xbf16>, vector<8x128xf32> -> vector<8x128xf32>
    %cst_12 = arith.constant 0.000000e+00 : f32
    %13 = vector.broadcast %cst_12 : f32 to vector<8x128xf32>
    %14 = arith.maximumf %12, %13 : vector<8x128xf32>
    %cst_13 = arith.constant dense<0.000000e+00> : vector<32x128xf32>
    %15 = tpu.matmul %1, %14, %cst_13 {dimension_numbers = #tpu.dot_dimension_numbers<[1], [0], [0], [1], [0, 0, 1, 1], [], []>} : vector<32x8xf32>, vector<8x128xf32>, vector<32x128xf32> -> vector<32x128xf32>
    %cst_14 = arith.constant 0.000000e+00 : f32
    %16 = vector.broadcast %cst_14 : f32 to vector<32x128xf32>
    %17 = arith.maximumf %15, %16 : vector<32x128xf32>
    %18 = arith.maximumf %9, %17 : vector<32x128xf32>
    %c2 = arith.constant 2 : index
    %c0_15 = arith.constant 0 : index
    %c0_16 = arith.constant 0 : index
    %19 = vector.load %arg1[%c2, %c0_15, %c0_16] : memref<8x8x128xbf16, #tpu.memory_space<vmem>>, vector<1x8x128xbf16>
    %20 = vector.shape_cast %19 : vector<1x8x128xbf16> to vector<8x128xbf16>
    %cst_17 = arith.constant dense<0.000000e+00> : vector<8x128xf32>
    %21 = tpu.matmul %0, %20, %cst_17 {dimension_numbers = #tpu.dot_dimension_numbers<[1], [0], [0], [1], [0, 0, 1, 1], [], []>} : vector<8x8xbf16>, vector<8x128xbf16>, vector<8x128xf32> -> vector<8x128xf32>
    %cst_18 = arith.constant 0.000000e+00 : f32
    %22 = vector.broadcast %cst_18 : f32 to vector<8x128xf32>
    %23 = arith.maximumf %21, %22 : vector<8x128xf32>
    %cst_19 = arith.constant dense<0.000000e+00> : vector<32x128xf32>
    %24 = tpu.matmul %1, %23, %cst_19 {dimension_numbers = #tpu.dot_dimension_numbers<[1], [0], [0], [1], [0, 0, 1, 1], [], []>} : vector<32x8xf32>, vector<8x128xf32>, vector<32x128xf32> -> vector<32x128xf32>
    %cst_20 = arith.constant 0.000000e+00 : f32
    %25 = vector.broadcast %cst_20 : f32 to vector<32x128xf32>
    %26 = arith.maximumf %24, %25 : vector<32x128xf32>
    %27 = arith.maximumf %18, %26 : vector<32x128xf32>
    %c3 = arith.constant 3 : index
    %c0_21 = arith.constant 0 : index
    %c0_22 = arith.constant 0 : index
    %28 = vector.load %arg1[%c3, %c0_21, %c0_22] : memref<8x8x128xbf16, #tpu.memory_space<vmem>>, vector<1x8x128xbf16>
    %29 = vector.shape_cast %28 : vector<1x8x128xbf16> to vector<8x128xbf16>
    %cst_23 = arith.constant dense<0.000000e+00> : vector<8x128xf32>
    %30 = tpu.matmul %0, %29, %cst_23 {dimension_numbers = #tpu.dot_dimension_numbers<[1], [0], [0], [1], [0, 0, 1, 1], [], []>} : vector<8x8xbf16>, vector<8x128xbf16>, vector<8x128xf32> -> vector<8x128xf32>
    %cst_24 = arith.constant 0.000000e+00 : f32
    %31 = vector.broadcast %cst_24 : f32 to vector<8x128xf32>
    %32 = arith.maximumf %30, %31 : vector<8x128xf32>
    %cst_25 = arith.constant dense<0.000000e+00> : vector<32x128xf32>
    %33 = tpu.matmul %1, %32, %cst_25 {dimension_numbers = #tpu.dot_dimension_numbers<[1], [0], [0], [1], [0, 0, 1, 1], [], []>} : vector<32x8xf32>, vector<8x128xf32>, vector<32x128xf32> -> vector<32x128xf32>
    %cst_26 = arith.constant 0.000000e+00 : f32
    %34 = vector.broadcast %cst_26 : f32 to vector<32x128xf32>
    %35 = arith.maximumf %33, %34 : vector<32x128xf32>
    %36 = arith.maximumf %27, %35 : vector<32x128xf32>
    %c4 = arith.constant 4 : index
    %c0_27 = arith.constant 0 : index
    %c0_28 = arith.constant 0 : index
    %37 = vector.load %arg1[%c4, %c0_27, %c0_28] : memref<8x8x128xbf16, #tpu.memory_space<vmem>>, vector<1x8x128xbf16>
    %38 = vector.shape_cast %37 : vector<1x8x128xbf16> to vector<8x128xbf16>
    %cst_29 = arith.constant dense<0.000000e+00> : vector<8x128xf32>
    %39 = tpu.matmul %0, %38, %cst_29 {dimension_numbers = #tpu.dot_dimension_numbers<[1], [0], [0], [1], [0, 0, 1, 1], [], []>} : vector<8x8xbf16>, vector<8x128xbf16>, vector<8x128xf32> -> vector<8x128xf32>
    %cst_30 = arith.constant 0.000000e+00 : f32
    %40 = vector.broadcast %cst_30 : f32 to vector<8x128xf32>
    %41 = arith.maximumf %39, %40 : vector<8x128xf32>
    %cst_31 = arith.constant dense<0.000000e+00> : vector<32x128xf32>
    %42 = tpu.matmul %1, %41, %cst_31 {dimension_numbers = #tpu.dot_dimension_numbers<[1], [0], [0], [1], [0, 0, 1, 1], [], []>} : vector<32x8xf32>, vector<8x128xf32>, vector<32x128xf32> -> vector<32x128xf32>
    %cst_32 = arith.constant 0.000000e+00 : f32
    %43 = vector.broadcast %cst_32 : f32 to vector<32x128xf32>
    %44 = arith.maximumf %42, %43 : vector<32x128xf32>
    %45 = arith.maximumf %36, %44 : vector<32x128xf32>
    %c5 = arith.constant 5 : index
    %c0_33 = arith.constant 0 : index
    %c0_34 = arith.constant 0 : index
    %46 = vector.load %arg1[%c5, %c0_33, %c0_34] : memref<8x8x128xbf16, #tpu.memory_space<vmem>>, vector<1x8x128xbf16>
    %47 = vector.shape_cast %46 : vector<1x8x128xbf16> to vector<8x128xbf16>
    %cst_35 = arith.constant dense<0.000000e+00> : vector<8x128xf32>
    %48 = tpu.matmul %0, %47, %cst_35 {dimension_numbers = #tpu.dot_dimension_numbers<[1], [0], [0], [1], [0, 0, 1, 1], [], []>} : vector<8x8xbf16>, vector<8x128xbf16>, vector<8x128xf32> -> vector<8x128xf32>
    %cst_36 = arith.constant 0.000000e+00 : f32
    %49 = vector.broadcast %cst_36 : f32 to vector<8x128xf32>
    %50 = arith.maximumf %48, %49 : vector<8x128xf32>
    %cst_37 = arith.constant dense<0.000000e+00> : vector<32x128xf32>
    %51 = tpu.matmul %1, %50, %cst_37 {dimension_numbers = #tpu.dot_dimension_numbers<[1], [0], [0], [1], [0, 0, 1, 1], [], []>} : vector<32x8xf32>, vector<8x128xf32>, vector<32x128xf32> -> vector<32x128xf32>
    %cst_38 = arith.constant 0.000000e+00 : f32
    %52 = vector.broadcast %cst_38 : f32 to vector<32x128xf32>
    %53 = arith.maximumf %51, %52 : vector<32x128xf32>
    %54 = arith.maximumf %45, %53 : vector<32x128xf32>
    %c6 = arith.constant 6 : index
    %c0_39 = arith.constant 0 : index
    %c0_40 = arith.constant 0 : index
    %55 = vector.load %arg1[%c6, %c0_39, %c0_40] : memref<8x8x128xbf16, #tpu.memory_space<vmem>>, vector<1x8x128xbf16>
    %56 = vector.shape_cast %55 : vector<1x8x128xbf16> to vector<8x128xbf16>
    %cst_41 = arith.constant dense<0.000000e+00> : vector<8x128xf32>
    %57 = tpu.matmul %0, %56, %cst_41 {dimension_numbers = #tpu.dot_dimension_numbers<[1], [0], [0], [1], [0, 0, 1, 1], [], []>} : vector<8x8xbf16>, vector<8x128xbf16>, vector<8x128xf32> -> vector<8x128xf32>
    %cst_42 = arith.constant 0.000000e+00 : f32
    %58 = vector.broadcast %cst_42 : f32 to vector<8x128xf32>
    %59 = arith.maximumf %57, %58 : vector<8x128xf32>
    %cst_43 = arith.constant dense<0.000000e+00> : vector<32x128xf32>
    %60 = tpu.matmul %1, %59, %cst_43 {dimension_numbers = #tpu.dot_dimension_numbers<[1], [0], [0], [1], [0, 0, 1, 1], [], []>} : vector<32x8xf32>, vector<8x128xf32>, vector<32x128xf32> -> vector<32x128xf32>
    %cst_44 = arith.constant 0.000000e+00 : f32
    %61 = vector.broadcast %cst_44 : f32 to vector<32x128xf32>
    %62 = arith.maximumf %60, %61 : vector<32x128xf32>
    %63 = arith.maximumf %54, %62 : vector<32x128xf32>
    %c7 = arith.constant 7 : index
    %c0_45 = arith.constant 0 : index
    %c0_46 = arith.constant 0 : index
    %64 = vector.load %arg1[%c7, %c0_45, %c0_46] : memref<8x8x128xbf16, #tpu.memory_space<vmem>>, vector<1x8x128xbf16>
    %65 = vector.shape_cast %64 : vector<1x8x128xbf16> to vector<8x128xbf16>
    %cst_47 = arith.constant dense<0.000000e+00> : vector<8x128xf32>
    %66 = tpu.matmul %0, %65, %cst_47 {dimension_numbers = #tpu.dot_dimension_numbers<[1], [0], [0], [1], [0, 0, 1, 1], [], []>} : vector<8x8xbf16>, vector<8x128xbf16>, vector<8x128xf32> -> vector<8x128xf32>
    %cst_48 = arith.constant 0.000000e+00 : f32
    %67 = vector.broadcast %cst_48 : f32 to vector<8x128xf32>
    %68 = arith.maximumf %66, %67 : vector<8x128xf32>
    %cst_49 = arith.constant dense<0.000000e+00> : vector<32x128xf32>
    %69 = tpu.matmul %1, %68, %cst_49 {dimension_numbers = #tpu.dot_dimension_numbers<[1], [0], [0], [1], [0, 0, 1, 1], [], []>} : vector<32x8xf32>, vector<8x128xf32>, vector<32x128xf32> -> vector<32x128xf32>
    %cst_50 = arith.constant 0.000000e+00 : f32
    %70 = vector.broadcast %cst_50 : f32 to vector<32x128xf32>
    %71 = arith.maximumf %69, %70 : vector<32x128xf32>
    %72 = arith.maximumf %63, %71 : vector<32x128xf32>
    %c0_51 = arith.constant 0 : index
    %c0_52 = arith.constant 0 : index
    %73 = vector.load %arg4[%c0_51, %c0_52] : memref<32x128xf32, #tpu.memory_space<vmem>>, vector<32x128xf32>
    tpu.vector_store %arg4[%c0_51, %c0_52], %72 {strides = array<i32>} : memref<32x128xf32, #tpu.memory_space<vmem>>, vector<32x128xf32>,
    return
  }
  func.func @transform_0(%arg0: i32) -> (i32, i32, i32) {
    %c0_i32 = arith.constant 0 : i32
    %c0_i32_0 = arith.constant 0 : i32
    %c0_i32_1 = arith.constant 0 : i32
    return %c0_i32, %c0_i32_0, %arg0 : i32, i32, i32
  }
  func.func @transform_1(%arg0: i32) -> (i32, i32) {
    %c0_i32 = arith.constant 0 : i32
    %c0_i32_0 = arith.constant 0 : i32
    %c0_i32_1 = arith.constant 0 : i32
    return %c0_i32, %c0_i32_0 : i32, i32
  }
  func.func @transform_2(%arg0: i32) -> (i32, i32) {
    %c0_i32 = arith.constant 0 : i32
    %c0_i32_0 = arith.constant 0 : i32
    %c0_i32_1 = arith.constant 0 : i32
    return %c0_i32, %c0_i32_0 : i32, i32
  }
  func.func @transform_3(%arg0: i32) -> (i32, i32) {
    %c0_i32 = arith.constant 0 : i32
    %c0_i32_0 = arith.constant 0 : i32
    return %c0_i32, %arg0 : i32, i32
  }
}

</mosaic_0001>

<llo_original>
// kernel: tpu_custom_call.1
$region0: #{tpu_custom_call.1}
  #allocation0 [shape = 'u32[]', space=smem, size = 0x4, offset = 0x4, fixed_abs, tag = 'smem constant byte address 0x4 - core index']
  #allocation1 [shape = 'u32[144,128]{1,0:T(1,128)}', space=vmem, size = 0x12000, scoped, tag = 'internal scratch']
  %s0 = inlined_call_operand.vmem [shape: bf16[8,8,128], index: 0, kind: input, shape index: {}]
  %s1 = inlined_call_operand.vmem [shape: bf16[8,8], index: 1, kind: input, shape index: {}]
  %s2 = inlined_call_operand.vmem [shape: f32[32,8], index: 2, kind: input, shape index: {}]
  %s3 = inlined_call_operand.hbm [shape: f32[32,128], index: 3, kind: output, shape index: {}]
  %s4 = sld [smem:[#allocation0]]
  $region22: #{tpu_custom_call.1} parent=0
    _
  %s6 = ssub.s32 1, %s4
  %s7 = scalar_select 0, %s6, %s4
  $region1: #{tpu_custom_call.1} parent=0
    #allocation2 [shape = 'u8[16384]{0}', space=vmem, size = 0x4000, scoped, tag = 'output window, operand 0, single buffered']
    #allocation3 [shape = 's32[1]{0}', space=sflag, size = 0x4, scoped, tag = 'scoped memory for tpu_custom_call.1']
    %8 = vsyncpa [#allocation3], 0
    // Predicated region
    $region2: #{tpu_custom_call.1} parent=1 // pred_check
      _
    $region3: #{tpu_custom_call.1} parent=1 // pred_check_branch
      %10 = sbr.rel (0) target = $region5
    $region4: #{tpu_custom_call.1} parent=1 // pred_region
      _
    $region5: #{tpu_custom_call.1} parent=1 // pred_fallthru
      _
    // Predicated region
    $region6: #{tpu_custom_call.1} parent=1 // pred_check
      _
    $region7: #{tpu_custom_call.1} parent=1 // pred_check_branch
      %12 = sbr.rel (0) target = $region9
    $region8: #{tpu_custom_call.1} parent=1 // pred_region
      _
    $region9: #{tpu_custom_call.1} parent=1 // pred_fallthru
      _
    // Predicated region
    $region10: #{tpu_custom_call.1} parent=1 // pred_check
      _
    $region11: #{tpu_custom_call.1} parent=1 // pred_check_branch
      %14 = sbr.rel (0) target = $region13
    $region12: #{tpu_custom_call.1} parent=1 // pred_region
      _
    $region13: #{tpu_custom_call.1} parent=1 // pred_fallthru
      _
    %v16 = vld [vmem:[%s1] sm:$0xf]
    %v17 = vld [vmem:[%s2] sm:$0xff]
    %v18 = vld [vmem:[%s2 + $0x8] sm:$0xff]
    %v19 = vld [vmem:[%s2 + $0x10] sm:$0xff]
    %v20 = vld [vmem:[%s2 + $0x18] sm:$0xff]
    %v21 = vld [vmem:[%s0] sm:$0xf]
    %vm22 = vcmask 64512
    %v24 = vsel %vm22, %v16, 0
    %vm26 = vcmask 1043456
    %v28 = vsel %vm26, %v21, 0
    %30 = vmatprep.subr.bf16.mxu0 0
    %31 = vmatpush1.bf16.msra.mxu0 0
    %32 = vmatprep.subr.bf16.mxu0 0
    %33 = vmatpush1.bf16.msra.mxu0 0
    %34 = vmatprep.subr.bf16.mxu0 0
    %35 = vmatpush1.bf16.msra.mxu0 0
    %36 = vmatprep.subr.bf16.mxu0 0
    %37 = vmatpush1.bf16.msra.mxu0 0
    %38 = vmatprep.subr.bf16.mxu0 0
    %39 = vmatpush1.bf16.msra.mxu0 0
    %40 = vmatprep.subr.bf16.mxu0 0
    %41 = vmatpush1.bf16.msra.mxu0 0
    %42 = vmatprep.subr.bf16.mxu0 0
    %43 = vmatpush1.bf16.msra.mxu0 0
    %44 = vmatprep.subr.bf16.mxu0 0
    %45 = vmatpush1.bf16.msra.mxu0 %v28
    %46 = vmatprep.subr.bf16.mxu0 0
    %47 = vmatpush2.bf16.msra.mxu0 0
    %48 = vmatprep.subr.bf16.mxu0 0
    %49 = vmatpush2.bf16.msra.mxu0 0
    %50 = vmatprep.subr.bf16.mxu0 0
    %51 = vmatpush2.bf16.msra.mxu0 0
    %52 = vmatprep.subr.bf16.mxu0 0
    %53 = vmatpush2.bf16.msra.mxu0 0
    %54 = vmatprep.subr.bf16.mxu0 0
    %55 = vmatpush2.bf16.msra.mxu0 0
    %56 = vmatprep.subr.bf16.mxu0 0
    %57 = vmatpush2.bf16.msra.mxu0 0
    %58 = vmatprep.subr.bf16.mxu0 0
    %59 = vmatpush2.bf16.msra.mxu0 0
    %60 = vmatprep.subr.bf16.mxu0 0
    %61 = vmatpush2.bf16.msra.mxu0 0
    %62 = vmatprep.mubr.bf16.mxu0 0
    %63 = vmatmul.mubr.bf16.gmra.mxu0 %v24
    %v64 = vpop.f32.mrf.mxu0
    %v65 = vadd.f32 0.0, %v64
    %v66 = vpop.f32.mrf.mxu0
    %v67 = vpop.f32.mrf.mxu0
    %v68 = vpop.f32.mrf.mxu0
    %69 = vdwg.mxu0
    %v70 = vmax.f32 %v65, 0.0
    %v72 = vsel %vm22, %v17, 0
    %v75 = vsel %vm22, %v18, 0
    %v78 = vsel %vm22, %v19, 0
    %v81 = vsel %vm22, %v20, 0
    %83 = vmatprep.subr.mxu0 0.0
    %84 = vmatpush1.msra.mxu0 0.0
    %85 = vmatprep.subr.mxu0 0.0
    %86 = vmatpush1.msra.mxu0 0.0
    %87 = vmatprep.subr.mxu0 0.0
    %88 = vmatpush1.msra.mxu0 0.0
    %89 = vmatprep.subr.mxu0 0.0
    %90 = vmatpush1.msra.mxu0 0.0
    %91 = vmatprep.subr.mxu0 0.0
    %92 = vmatpush1.msra.mxu0 0.0
    %93 = vmatprep.subr.mxu0 0.0
    %94 = vmatpush1.msra.mxu0 0.0
    %95 = vmatprep.subr.mxu0 0.0
    %96 = vmatpush1.msra.mxu0 0.0
    %97 = vmatprep.subr.mxu0 0.0
    %98 = vmatpush1.msra.mxu0 0.0
    %99 = vmatprep.subr.mxu0 0.0
    %100 = vmatpush1.msra.mxu0 0.0
    %101 = vmatprep.subr.mxu0 0.0
    %102 = vmatpush1.msra.mxu0 0.0
    %103 = vmatprep.subr.mxu0 0.0
    %104 = vmatpush1.msra.mxu0 0.0
    %105 = vmatprep.subr.mxu0 0.0
    %106 = vmatpush1.msra.mxu0 0.0
    %107 = vmatprep.subr.mxu0 0.0
    %108 = vmatpush1.msra.mxu0 0.0
    %109 = vmatprep.subr.mxu0 0.0
    %110 = vmatpush1.msra.mxu0 0.0
    %111 = vmatprep.subr.mxu0 0.0
    %112 = vmatpush1.msra.mxu0 0.0
    %113 = vmatprep.subr.mxu0 0.0
    %114 = vmatpush1.msra.mxu0 %v70
    %115 = vmatprep.subr.mxu0 0.0
    %116 = vmatpush2.msra.mxu0 0.0
    %117 = vmatprep.subr.mxu0 0.0
    %118 = vmatpush2.msra.mxu0 0.0
    %119 = vmatprep.subr.mxu0 0.0
    %120 = vmatpush2.msra.mxu0 0.0
    %121 = vmatprep.subr.mxu0 0.0
    %122 = vmatpush2.msra.mxu0 0.0
    %123 = vmatprep.subr.mxu0 0.0
    %124 = vmatpush2.msra.mxu0 0.0
    %125 = vmatprep.subr.mxu0 0.0
    %126 = vmatpush2.msra.mxu0 0.0
    %127 = vmatprep.subr.mxu0 0.0
    %128 = vmatpush2.msra.mxu0 0.0
    %129 = vmatprep.subr.mxu0 0.0
    %130 = vmatpush2.msra.mxu0 0.0
    %131 = vmatprep.subr.mxu0 0.0
    %132 = vmatpush2.msra.mxu0 0.0
    %133 = vmatprep.subr.mxu0 0.0
    %134 = vmatpush2.msra.mxu0 0.0
    %135 = vmatprep.subr.mxu0 0.0
    %136 = vmatpush2.msra.mxu0 0.0
    %137 = vmatprep.subr.mxu0 0.0
    %138 = vmatpush2.msra.mxu0 0.0
    %139 = vmatprep.subr.mxu0 0.0
    %140 = vmatpush2.msra.mxu0 0.0
    %141 = vmatprep.subr.mxu0 0.0
    %142 = vmatpush2.msra.mxu0 0.0
    %143 = vmatprep.subr.mxu0 0.0
    %144 = vmatpush2.msra.mxu0 0.0
    %145 = vmatprep.subr.mxu0 0.0
    %146 = vmatpush2.msra.mxu0 0.0
    %147 = vmatprep.mubr.f32.mxu0 0.0
    %148 = vmatmul.mubr.f32.gmra.mxu0 %v72
    %v149 = vpop.f32.mrf.mxu0
    %v150 = vadd.f32 0.0, %v149
    %v151 = vpop.f32.mrf.mxu0
    %152 = vmatprep.mubr.f32.mxu0 0.0
    %153 = vmatmul.mubr.f32.gmra.mxu0 %v75
    %v154 = vpop.f32.mrf.mxu0
    %v155 = vadd.f32 0.0, %v154
    %v156 = vpop.f32.mrf.mxu0
    %157 = vmatprep.mubr.f32.mxu0 0.0
    %158 = vmatmul.mubr.f32.gmra.mxu0 %v78
    %v159 = vpop.f32.mrf.mxu0
    %v160 = vadd.f32 0.0, %v159
    %v161 = vpop.f32.mrf.mxu0
    %162 = vmatprep.mubr.f32.mxu0 0.0
    %163 = vmatmul.mubr.f32.gmra.mxu0 %v81
    %v164 = vpop.f32.mrf.mxu0
    %v165 = vadd.f32 0.0, %v164
    %v166 = vpop.f32.mrf.mxu0
    %167 = vdwg.mxu0
    %v168 = vmax.f32 %v150, 0.0
    %v169 = vmax.f32 %v155, 0.0
    %v170 = vmax.f32 %v160, 0.0
    %v171 = vmax.f32 %v165, 0.0
    %s172 = scalar_lea.vmem %s0, 4
    %v173 = vld [vmem:[%s172] sm:$0xf]
    %v175 = vsel %vm26, %v173, 0
    %177 = vmatprep.subr.bf16.mxu0 0
    %178 = vmatpush1.bf16.msra.mxu0 0
    %179 = vmatprep.subr.bf16.mxu0 0
    %180 = vmatpush1.bf16.msra.mxu0 0
    %181 = vmatprep.subr.bf16.mxu0 0
    %182 = vmatpush1.bf16.msra.mxu0 0
    %183 = vmatprep.subr.bf16.mxu0 0
    %184 = vmatpush1.bf16.msra.mxu0 0
    %185 = vmatprep.subr.bf16.mxu0 0
    %186 = vmatpush1.bf16.msra.mxu0 0
    %187 = vmatprep.subr.bf16.mxu0 0
    %188 = vmatpush1.bf16.msra.mxu0 0
    %189 = vmatprep.subr.bf16.mxu0 0
    %190 = vmatpush1.bf16.msra.mxu0 0
    %191 = vmatprep.subr.bf16.mxu0 0
    %192 = vmatpush1.bf16.msra.mxu0 %v175
    %193 = vmatprep.subr.bf16.mxu0 0
    %194 = vmatpush2.bf16.msra.mxu0 0
    %195 = vmatprep.subr.bf16.mxu0 0
    %196 = vmatpush2.bf16.msra.mxu0 0
    %197 = vmatprep.subr.bf16.mxu0 0
    %198 = vmatpush2.bf16.msra.mxu0 0
    %199 = vmatprep.subr.bf16.mxu0 0
    %200 = vmatpush2.bf16.msra.mxu0 0
    %201 = vmatprep.subr.bf16.mxu0 0
    %202 = vmatpush2.bf16.msra.mxu0 0
    %203 = vmatprep.subr.bf16.mxu0 0
    %204 = vmatpush2.bf16.msra.mxu0 0
    %205 = vmatprep.subr.bf16.mxu0 0
    %206 = vmatpush2.bf16.msra.mxu0 0
    %207 = vmatprep.subr.bf16.mxu0 0
    %208 = vmatpush2.bf16.msra.mxu0 0
    %209 = vmatprep.mubr.bf16.mxu0 0
    %210 = vmatmul.mubr.bf16.gmra.mxu0 %v24
    %v211 = vpop.f32.mrf.mxu0
    %v212 = vadd.f32 0.0, %v211
    %v213 = vpop.f32.mrf.mxu0
    %v214 = vpop.f32.mrf.mxu0
    %v215 = vpop.f32.mrf.mxu0
    %216 = vdwg.mxu0
    %v217 = vmax.f32 %v212, 0.0
    %218 = vmatprep.subr.mxu0 0.0
    %219 = vmatpush1.msra.mxu0 0.0
    %220 = vmatprep.subr.mxu0 0.0
    %221 = vmatpush1.msra.mxu0 0.0
    %222 = vmatprep.subr.mxu0 0.0
    %223 = vmatpush1.msra.mxu0 0.0
    %224 = vmatprep.subr.mxu0 0.0
    %225 = vmatpush1.msra.mxu0 0.0
    %226 = vmatprep.subr.mxu0 0.0
    %227 = vmatpush1.msra.mxu0 0.0
    %228 = vmatprep.subr.mxu0 0.0
    %229 = vmatpush1.msra.mxu0 0.0
    %230 = vmatprep.subr.mxu0 0.0
    %231 = vmatpush1.msra.mxu0 0.0
    %232 = vmatprep.subr.mxu0 0.0
    %233 = vmatpush1.msra.mxu0 0.0
    %234 = vmatprep.subr.mxu0 0.0
    %235 = vmatpush1.msra.mxu0 0.0
    %236 = vmatprep.subr.mxu0 0.0
    %237 = vmatpush1.msra.mxu0 0.0
    %238 = vmatprep.subr.mxu0 0.0
    %239 = vmatpush1.msra.mxu0 0.0
    %240 = vmatprep.subr.mxu0 0.0
    %241 = vmatpush1.msra.mxu0 0.0
    %242 = vmatprep.subr.mxu0 0.0
    %243 = vmatpush1.msra.mxu0 0.0
    %244 = vmatprep.subr.mxu0 0.0
    %245 = vmatpush1.msra.mxu0 0.0
    %246 = vmatprep.subr.mxu0 0.0
    %247 = vmatpush1.msra.mxu0 0.0
    %248 = vmatprep.subr.mxu0 0.0
    %249 = vmatpush1.msra.mxu0 %v217
    %250 = vmatprep.subr.mxu0 0.0
    %251 = vmatpush2.msra.mxu0 0.0
    %252 = vmatprep.subr.mxu0 0.0
    %253 = vmatpush2.msra.mxu0 0.0
    %254 = vmatprep.subr.mxu0 0.0
    %255 = vmatpush2.msra.mxu0 0.0
    %256 = vmatprep.subr.mxu0 0.0
    %257 = vmatpush2.msra.mxu0 0.0
    %258 = vmatprep.subr.mxu0 0.0
    %259 = vmatpush2.msra.mxu0 0.0
    %260 = vmatprep.subr.mxu0 0.0
    %261 = vmatpush2.msra.mxu0 0.0
    %262 = vmatprep.subr.mxu0 0.0
    %263 = vmatpush2.msra.mxu0 0.0
    %264 = vmatprep.subr.mxu0 0.0
    %265 = vmatpush2.msra.mxu0 0.0
    %266 = vmatprep.subr.mxu0 0.0
    %267 = vmatpush2.msra.mxu0 0.0
    %268 = vmatprep.subr.mxu0 0.0
    %269 = vmatpush2.msra.mxu0 0.0
    %270 = vmatprep.subr.mxu0 0.0
    %271 = vmatpush2.msra.mxu0 0.0
    %272 = vmatprep.subr.mxu0 0.0
    %273 = vmatpush2.msra.mxu0 0.0
    %274 = vmatprep.subr.mxu0 0.0
    %275 = vmatpush2.msra.mxu0 0.0
    %276 = vmatprep.subr.mxu0 0.0
    %277 = vmatpush2.msra.mxu0 0.0
    %278 = vmatprep.subr.mxu0 0.0
    %279 = vmatpush2.msra.mxu0 0.0
    %280 = vmatprep.subr.mxu0 0.0
    %281 = vmatpush2.msra.mxu0 0.0
    %282 = vmatprep.mubr.f32.mxu0 0.0
    %283 = vmatmul.mubr.f32.gmra.mxu0 %v72
    %v284 = vpop.f32.mrf.mxu0
    %v285 = vadd.f32 0.0, %v284
    %v286 = vpop.f32.mrf.mxu0
    %287 = vmatprep.mubr.f32.mxu0 0.0
    %288 = vmatmul.mubr.f32.gmra.mxu0 %v75
    %v289 = vpop.f32.mrf.mxu0
    %v290 = vadd.f32 0.0, %v289
    %v291 = vpop.f32.mrf.mxu0
    %292 = vmatprep.mubr.f32.mxu0 0.0
    %293 = vmatmul.mubr.f32.gmra.mxu0 %v78
    %v294 = vpop.f32.mrf.mxu0
    %v295 = vadd.f32 0.0, %v294
    %v296 = vpop.f32.mrf.mxu0
    %297 = vmatprep.mubr.f32.mxu0 0.0
    %298 = vmatmul.mubr.f32.gmra.mxu0 %v81
    %v299 = vpop.f32.mrf.mxu0
    %v300 = vadd.f32 0.0, %v299
    %v301 = vpop.f32.mrf.mxu0
    %302 = vdwg.mxu0
    %v303 = vmax.f32 %v285, 0.0
    %v304 = vmax.f32 %v290, 0.0
    %v305 = vmax.f32 %v295, 0.0
    %v306 = vmax.f32 %v300, 0.0
    %v307 = vmax.f32 %v168, %v303
    %v308 = vmax.f32 %v169, %v304
    %v309 = vmax.f32 %v170, %v305
    %v310 = vmax.f32 %v171, %v306
    %s311 = scalar_lea.vmem %s0, 8
    %v312 = vld [vmem:[%s311] sm:$0xf]
    %v314 = vsel %vm26, %v312, 0
    %316 = vmatprep.subr.bf16.mxu0 0
    %317 = vmatpush1.bf16.msra.mxu0 0
    %318 = vmatprep.subr.bf16.mxu0 0
    %319 = vmatpush1.bf16.msra.mxu0 0
    %320 = vmatprep.subr.bf16.mxu0 0
    %321 = vmatpush1.bf16.msra.mxu0 0
    %322 = vmatprep.subr.bf16.mxu0 0
    %323 = vmatpush1.bf16.msra.mxu0 0
    %324 = vmatprep.subr.bf16.mxu0 0
    %325 = vmatpush1.bf16.msra.mxu0 0
    %326 = vmatprep.subr.bf16.mxu0 0
    %327 = vmatpush1.bf16.msra.mxu0 0
    %328 = vmatprep.subr.bf16.mxu0 0
    %329 = vmatpush1.bf16.msra.mxu0 0
    %330 = vmatprep.subr.bf16.mxu0 0
    %331 = vmatpush1.bf16.msra.mxu0 %v314
    %332 = vmatprep.subr.bf16.mxu0 0
    %333 = vmatpush2.bf16.msra.mxu0 0
    %334 = vmatprep.subr.bf16.mxu0 0
    %335 = vmatpush2.bf16.msra.mxu0 0
    %336 = vmatprep.subr.bf16.mxu0 0
    %337 = vmatpush2.bf16.msra.mxu0 0
    %338 = vmatprep.subr.bf16.mxu0 0
    %339 = vmatpush2.bf16.msra.mxu0 0
    %340 = vmatprep.subr.bf16.mxu0 0
    %341 = vmatpush2.bf16.msra.mxu0 0
    %342 = vmatprep.subr.bf16.mxu0 0
    %343 = vmatpush2.bf16.msra.mxu0 0
    %344 = vmatprep.subr.bf16.mxu0 0
    %345 = vmatpush2.bf16.msra.mxu0 0
    %346 = vmatprep.subr.bf16.mxu0 0
    %347 = vmatpush2.bf16.msra.mxu0 0
    %348 = vmatprep.mubr.bf16.mxu0 0
    %349 = vmatmul.mubr.bf16.gmra.mxu0 %v24
    %v350 = vpop.f32.mrf.mxu0
    %v351 = vadd.f32 0.0, %v350
    %v352 = vpop.f32.mrf.mxu0
    %v353 = vpop.f32.mrf.mxu0
    %v354 = vpop.f32.mrf.mxu0
    %355 = vdwg.mxu0
    %v356 = vmax.f32 %v351, 0.0
    %357 = vmatprep.subr.mxu0 0.0
    %358 = vmatpush1.msra.mxu0 0.0
    %359 = vmatprep.subr.mxu0 0.0
    %360 = vmatpush1.msra.mxu0 0.0
    %361 = vmatprep.subr.mxu0 0.0
    %362 = vmatpush1.msra.mxu0 0.0
    %363 = vmatprep.subr.mxu0 0.0
    %364 = vmatpush1.msra.mxu0 0.0
    %365 = vmatprep.subr.mxu0 0.0
    %366 = vmatpush1.msra.mxu0 0.0
    %367 = vmatprep.subr.mxu0 0.0
    %368 = vmatpush1.msra.mxu0 0.0
    %369 = vmatprep.subr.mxu0 0.0
    %370 = vmatpush1.msra.mxu0 0.0
    %371 = vmatprep.subr.mxu0 0.0
    %372 = vmatpush1.msra.mxu0 0.0
    %373 = vmatprep.subr.mxu0 0.0
    %374 = vmatpush1.msra.mxu0 0.0
    %375 = vmatprep.subr.mxu0 0.0
    %376 = vmatpush1.msra.mxu0 0.0
    %377 = vmatprep.subr.mxu0 0.0
    %378 = vmatpush1.msra.mxu0 0.0
    %379 = vmatprep.subr.mxu0 0.0
    %380 = vmatpush1.msra.mxu0 0.0
    %381 = vmatprep.subr.mxu0 0.0
    %382 = vmatpush1.msra.mxu0 0.0
    %383 = vmatprep.subr.mxu0 0.0
    %384 = vmatpush1.msra.mxu0 0.0
    %385 = vmatprep.subr.mxu0 0.0
    %386 = vmatpush1.msra.mxu0 0.0
    %387 = vmatprep.subr.mxu0 0.0
    %388 = vmatpush1.msra.mxu0 %v356
    %389 = vmatprep.subr.mxu0 0.0
    %390 = vmatpush2.msra.mxu0 0.0
    %391 = vmatprep.subr.mxu0 0.0
    %392 = vmatpush2.msra.mxu0 0.0
    %393 = vmatprep.subr.mxu0 0.0
    %394 = vmatpush2.msra.mxu0 0.0
    %395 = vmatprep.subr.mxu0 0.0
    %396 = vmatpush2.msra.mxu0 0.0
    %397 = vmatprep.subr.mxu0 0.0
    %398 = vmatpush2.msra.mxu0 0.0
    %399 = vmatprep.subr.mxu0 0.0
    %400 = vmatpush2.msra.mxu0 0.0
    %401 = vmatprep.subr.mxu0 0.0
    %402 = vmatpush2.msra.mxu0 0.0
    %403 = vmatprep.subr.mxu0 0.0
    %404 = vmatpush2.msra.mxu0 0.0
    %405 = vmatprep.subr.mxu0 0.0
    %406 = vmatpush2.msra.mxu0 0.0
    %407 = vmatprep.subr.mxu0 0.0
    %408 = vmatpush2.msra.mxu0 0.0
    %409 = vmatprep.subr.mxu0 0.0
    %410 = vmatpush2.msra.mxu0 0.0
    %411 = vmatprep.subr.mxu0 0.0
    %412 = vmatpush2.msra.mxu0 0.0
    %413 = vmatprep.subr.mxu0 0.0
    %414 = vmatpush2.msra.mxu0 0.0
    %415 = vmatprep.subr.mxu0 0.0
    %416 = vmatpush2.msra.mxu0 0.0
    %417 = vmatprep.subr.mxu0 0.0
    %418 = vmatpush2.msra.mxu0 0.0
    %419 = vmatprep.subr.mxu0 0.0
    %420 = vmatpush2.msra.mxu0 0.0
    %421 = vmatprep.mubr.f32.mxu0 0.0
    %422 = vmatmul.mubr.f32.gmra.mxu0 %v72
    %v423 = vpop.f32.mrf.mxu0
    %v424 = vadd.f32 0.0, %v423
    %v425 = vpop.f32.mrf.mxu0
    %426 = vmatprep.mubr.f32.mxu0 0.0
    %427 = vmatmul.mubr.f32.gmra.mxu0 %v75
    %v428 = vpop.f32.mrf.mxu0
    %v429 = vadd.f32 0.0, %v428
    %v430 = vpop.f32.mrf.mxu0
    %431 = vmatprep.mubr.f32.mxu0 0.0
    %432 = vmatmul.mubr.f32.gmra.mxu0 %v78
    %v433 = vpop.f32.mrf.mxu0
    %v434 = vadd.f32 0.0, %v433
    %v435 = vpop.f32.mrf.mxu0
    %436 = vmatprep.mubr.f32.mxu0 0.0
    %437 = vmatmul.mubr.f32.gmra.mxu0 %v81
    %v438 = vpop.f32.mrf.mxu0
    %v439 = vadd.f32 0.0, %v438
    %v440 = vpop.f32.mrf.mxu0
    %441 = vdwg.mxu0
    %v442 = vmax.f32 %v424, 0.0
    %v443 = vmax.f32 %v429, 0.0
    %v444 = vmax.f32 %v434, 0.0
    %v445 = vmax.f32 %v439, 0.0
    %v446 = vmax.f32 %v307, %v442
    %v447 = vmax.f32 %v308, %v443
    %v448 = vmax.f32 %v309, %v444
    %v449 = vmax.f32 %v310, %v445
    %s450 = scalar_lea.vmem %s0, 12
    %v451 = vld [vmem:[%s450] sm:$0xf]
    %v453 = vsel %vm26, %v451, 0
    %455 = vmatprep.subr.bf16.mxu0 0
    %456 = vmatpush1.bf16.msra.mxu0 0
    %457 = vmatprep.subr.bf16.mxu0 0
    %458 = vmatpush1.bf16.msra.mxu0 0
    %459 = vmatprep.subr.bf16.mxu0 0
    %460 = vmatpush1.bf16.msra.mxu0 0
    %461 = vmatprep.subr.bf16.mxu0 0
    %462 = vmatpush1.bf16.msra.mxu0 0
    %463 = vmatprep.subr.bf16.mxu0 0
    %464 = vmatpush1.bf16.msra.mxu0 0
    %465 = vmatprep.subr.bf16.mxu0 0
    %466 = vmatpush1.bf16.msra.mxu0 0
    %467 = vmatprep.subr.bf16.mxu0 0
    %468 = vmatpush1.bf16.msra.mxu0 0
    %469 = vmatprep.subr.bf16.mxu0 0
    %470 = vmatpush1.bf16.msra.mxu0 %v453
    %471 = vmatprep.subr.bf16.mxu0 0
    %472 = vmatpush2.bf16.msra.mxu0 0
    %473 = vmatprep.subr.bf16.mxu0 0
    %474 = vmatpush2.bf16.msra.mxu0 0
    %475 = vmatprep.subr.bf16.mxu0 0
    %476 = vmatpush2.bf16.msra.mxu0 0
    %477 = vmatprep.subr.bf16.mxu0 0
    %478 = vmatpush2.bf16.msra.mxu0 0
    %479 = vmatprep.subr.bf16.mxu0 0
    %480 = vmatpush2.bf16.msra.mxu0 0
    %481 = vmatprep.subr.bf16.mxu0 0
    %482 = vmatpush2.bf16.msra.mxu0 0
    %483 = vmatprep.subr.bf16.mxu0 0
    %484 = vmatpush2.bf16.msra.mxu0 0
    %485 = vmatprep.subr.bf16.mxu0 0
    %486 = vmatpush2.bf16.msra.mxu0 0
    %487 = vmatprep.mubr.bf16.mxu0 0
    %488 = vmatmul.mubr.bf16.gmra.mxu0 %v24
    %v489 = vpop.f32.mrf.mxu0
    %v490 = vadd.f32 0.0, %v489
    %v491 = vpop.f32.mrf.mxu0
    %v492 = vpop.f32.mrf.mxu0
    %v493 = vpop.f32.mrf.mxu0
    %494 = vdwg.mxu0
    %v495 = vmax.f32 %v490, 0.0
    %496 = vmatprep.subr.mxu0 0.0
    %497 = vmatpush1.msra.mxu0 0.0
    %498 = vmatprep.subr.mxu0 0.0
    %499 = vmatpush1.msra.mxu0 0.0
    %500 = vmatprep.subr.mxu0 0.0
    %501 = vmatpush1.msra.mxu0 0.0
    %502 = vmatprep.subr.mxu0 0.0
    %503 = vmatpush1.msra.mxu0 0.0
    %504 = vmatprep.subr.mxu0 0.0
    %505 = vmatpush1.msra.mxu0 0.0
    %506 = vmatprep.subr.mxu0 0.0
    %507 = vmatpush1.msra.mxu0 0.0
    %508 = vmatprep.subr.mxu0 0.0
    %509 = vmatpush1.msra.mxu0 0.0
    %510 = vmatprep.subr.mxu0 0.0
    %511 = vmatpush1.msra.mxu0 0.0
    %512 = vmatprep.subr.mxu0 0.0
    %513 = vmatpush1.msra.mxu0 0.0
    %514 = vmatprep.subr.mxu0 0.0
    %515 = vmatpush1.msra.mxu0 0.0
    %516 = vmatprep.subr.mxu0 0.0
    %517 = vmatpush1.msra.mxu0 0.0
    %518 = vmatprep.subr.mxu0 0.0
    %519 = vmatpush1.msra.mxu0 0.0
    %520 = vmatprep.subr.mxu0 0.0
    %521 = vmatpush1.msra.mxu0 0.0
    %522 = vmatprep.subr.mxu0 0.0
    %523 = vmatpush1.msra.mxu0 0.0
    %524 = vmatprep.subr.mxu0 0.0
    %525 = vmatpush1.msra.mxu0 0.0
    %526 = vmatprep.subr.mxu0 0.0
    %527 = vmatpush1.msra.mxu0 %v495
    %528 = vmatprep.subr.mxu0 0.0
    %529 = vmatpush2.msra.mxu0 0.0
    %530 = vmatprep.subr.mxu0 0.0
    %531 = vmatpush2.msra.mxu0 0.0
    %532 = vmatprep.subr.mxu0 0.0
    %533 = vmatpush2.msra.mxu0 0.0
    %534 = vmatprep.subr.mxu0 0.0
    %535 = vmatpush2.msra.mxu0 0.0
    %536 = vmatprep.subr.mxu0 0.0
    %537 = vmatpush2.msra.mxu0 0.0
    %538 = vmatprep.subr.mxu0 0.0
    %539 = vmatpush2.msra.mxu0 0.0
    %540 = vmatprep.subr.mxu0 0.0
    %541 = vmatpush2.msra.mxu0 0.0
    %542 = vmatprep.subr.mxu0 0.0
    %543 = vmatpush2.msra.mxu0 0.0
    %544 = vmatprep.subr.mxu0 0.0
    %545 = vmatpush2.msra.mxu0 0.0
    %546 = vmatprep.subr.mxu0 0.0
    %547 = vmatpush2.msra.mxu0 0.0
    %548 = vmatprep.subr.mxu0 0.0
    %549 = vmatpush2.msra.mxu0 0.0
    %550 = vmatprep.subr.mxu0 0.0
    %551 = vmatpush2.msra.mxu0 0.0
    %552 = vmatprep.subr.mxu0 0.0
    %553 = vmatpush2.msra.mxu0 0.0
    %554 = vmatprep.subr.mxu0 0.0
    %555 = vmatpush2.msra.mxu0 0.0
    %556 = vmatprep.subr.mxu0 0.0
    %557 = vmatpush2.msra.mxu0 0.0
    %558 = vmatprep.subr.mxu0 0.0
    %559 = vmatpush2.msra.mxu0 0.0
    %560 = vmatprep.mubr.f32.mxu0 0.0
    %561 = vmatmul.mubr.f32.gmra.mxu0 %v72
    %v562 = vpop.f32.mrf.mxu0
    %v563 = vadd.f32 0.0, %v562
    %v564 = vpop.f32.mrf.mxu0
    %565 = vmatprep.mubr.f32.mxu0 0.0
    %566 = vmatmul.mubr.f32.gmra.mxu0 %v75
    %v567 = vpop.f32.mrf.mxu0
    %v568 = vadd.f32 0.0, %v567
    %v569 = vpop.f32.mrf.mxu0
    %570 = vmatprep.mubr.f32.mxu0 0.0
    %571 = vmatmul.mubr.f32.gmra.mxu0 %v78
    %v572 = vpop.f32.mrf.mxu0
    %v573 = vadd.f32 0.0, %v572
    %v574 = vpop.f32.mrf.mxu0
    %575 = vmatprep.mubr.f32.mxu0 0.0
    %576 = vmatmul.mubr.f32.gmra.mxu0 %v81
    %v577 = vpop.f32.mrf.mxu0
    %v578 = vadd.f32 0.0, %v577
    %v579 = vpop.f32.mrf.mxu0
    %580 = vdwg.mxu0
    %v581 = vmax.f32 %v563, 0.0
    %v582 = vmax.f32 %v568, 0.0
    %v583 = vmax.f32 %v573, 0.0
    %v584 = vmax.f32 %v578, 0.0
    %v585 = vmax.f32 %v446, %v581
    %v586 = vmax.f32 %v447, %v582
    %v587 = vmax.f32 %v448, %v583
    %v588 = vmax.f32 %v449, %v584
    %s589 = scalar_lea.vmem %s0, 16
    %v590 = vld [vmem:[%s589] sm:$0xf]
    %v592 = vsel %vm26, %v590, 0
    %594 = vmatprep.subr.bf16.mxu0 0
    %595 = vmatpush1.bf16.msra.mxu0 0
    %596 = vmatprep.subr.bf16.mxu0 0
    %597 = vmatpush1.bf16.msra.mxu0 0
    %598 = vmatprep.subr.bf16.mxu0 0
    %599 = vmatpush1.bf16.msra.mxu0 0
    %600 = vmatprep.subr.bf16.mxu0 0
    %601 = vmatpush1.bf16.msra.mxu0 0
    %602 = vmatprep.subr.bf16.mxu0 0
    %603 = vmatpush1.bf16.msra.mxu0 0
    %604 = vmatprep.subr.bf16.mxu0 0
    %605 = vmatpush1.bf16.msra.mxu0 0
    %606 = vmatprep.subr.bf16.mxu0 0
    %607 = vmatpush1.bf16.msra.mxu0 0
    %608 = vmatprep.subr.bf16.mxu0 0
    %609 = vmatpush1.bf16.msra.mxu0 %v592
    %610 = vmatprep.subr.bf16.mxu0 0
    %611 = vmatpush2.bf16.msra.mxu0 0
    %612 = vmatprep.subr.bf16.mxu0 0
    %613 = vmatpush2.bf16.msra.mxu0 0
    %614 = vmatprep.subr.bf16.mxu0 0
    %615 = vmatpush2.bf16.msra.mxu0 0
    %616 = vmatprep.subr.bf16.mxu0 0
    %617 = vmatpush2.bf16.msra.mxu0 0
    %618 = vmatprep.subr.bf16.mxu0 0
    %619 = vmatpush2.bf16.msra.mxu0 0
    %620 = vmatprep.subr.bf16.mxu0 0
    %621 = vmatpush2.bf16.msra.mxu0 0
    %622 = vmatprep.subr.bf16.mxu0 0
    %623 = vmatpush2.bf16.msra.mxu0 0
    %624 = vmatprep.subr.bf16.mxu0 0
    %625 = vmatpush2.bf16.msra.mxu0 0
    %626 = vmatprep.mubr.bf16.mxu0 0
    %627 = vmatmul.mubr.bf16.gmra.mxu0 %v24
    %v628 = vpop.f32.mrf.mxu0
    %v629 = vadd.f32 0.0, %v628
    %v630 = vpop.f32.mrf.mxu0
    %v631 = vpop.f32.mrf.mxu0
    %v632 = vpop.f32.mrf.mxu0
    %633 = vdwg.mxu0
    %v634 = vmax.f32 %v629, 0.0
    %635 = vmatprep.subr.mxu0 0.0
    %636 = vmatpush1.msra.mxu0 0.0
    %637 = vmatprep.subr.mxu0 0.0
    %638 = vmatpush1.msra.mxu0 0.0
    %639 = vmatprep.subr.mxu0 0.0
    %640 = vmatpush1.msra.mxu0 0.0
    %641 = vmatprep.subr.mxu0 0.0
    %642 = vmatpush1.msra.mxu0 0.0
    %643 = vmatprep.subr.mxu0 0.0
    %644 = vmatpush1.msra.mxu0 0.0
    %645 = vmatprep.subr.mxu0 0.0
    %646 = vmatpush1.msra.mxu0 0.0
    %647 = vmatprep.subr.mxu0 0.0
    %648 = vmatpush1.msra.mxu0 0.0
    %649 = vmatprep.subr.mxu0 0.0
    %650 = vmatpush1.msra.mxu0 0.0
    %651 = vmatprep.subr.mxu0 0.0
    %652 = vmatpush1.msra.mxu0 0.0
    %653 = vmatprep.subr.mxu0 0.0
    %654 = vmatpush1.msra.mxu0 0.0
    %655 = vmatprep.subr.mxu0 0.0
    %656 = vmatpush1.msra.mxu0 0.0
    %657 = vmatprep.subr.mxu0 0.0
    %658 = vmatpush1.msra.mxu0 0.0
    %659 = vmatprep.subr.mxu0 0.0
    %660 = vmatpush1.msra.mxu0 0.0
    %661 = vmatprep.subr.mxu0 0.0
    %662 = vmatpush1.msra.mxu0 0.0
    %663 = vmatprep.subr.mxu0 0.0
    %664 = vmatpush1.msra.mxu0 0.0
    %665 = vmatprep.subr.mxu0 0.0
    %666 = vmatpush1.msra.mxu0 %v634
    %667 = vmatprep.subr.mxu0 0.0
    %668 = vmatpush2.msra.mxu0 0.0
    %669 = vmatprep.subr.mxu0 0.0
    %670 = vmatpush2.msra.mxu0 0.0
    %671 = vmatprep.subr.mxu0 0.0
    %672 = vmatpush2.msra.mxu0 0.0
    %673 = vmatprep.subr.mxu0 0.0
    %674 = vmatpush2.msra.mxu0 0.0
    %675 = vmatprep.subr.mxu0 0.0
    %676 = vmatpush2.msra.mxu0 0.0
    %677 = vmatprep.subr.mxu0 0.0
    %678 = vmatpush2.msra.mxu0 0.0
    %679 = vmatprep.subr.mxu0 0.0
    %680 = vmatpush2.msra.mxu0 0.0
    %681 = vmatprep.subr.mxu0 0.0
    %682 = vmatpush2.msra.mxu0 0.0
    %683 = vmatprep.subr.mxu0 0.0
    %684 = vmatpush2.msra.mxu0 0.0
    %685 = vmatprep.subr.mxu0 0.0
    %686 = vmatpush2.msra.mxu0 0.0
    %687 = vmatprep.subr.mxu0 0.0
    %688 = vmatpush2.msra.mxu0 0.0
    %689 = vmatprep.subr.mxu0 0.0
    %690 = vmatpush2.msra.mxu0 0.0
    %691 = vmatprep.subr.mxu0 0.0
    %692 = vmatpush2.msra.mxu0 0.0
    %693 = vmatprep.subr.mxu0 0.0
    %694 = vmatpush2.msra.mxu0 0.0
    %695 = vmatprep.subr.mxu0 0.0
    %696 = vmatpush2.msra.mxu0 0.0
    %697 = vmatprep.subr.mxu0 0.0
    %698 = vmatpush2.msra.mxu0 0.0
    %699 = vmatprep.mubr.f32.mxu0 0.0
    %700 = vmatmul.mubr.f32.gmra.mxu0 %v72
    %v701 = vpop.f32.mrf.mxu0
    %v702 = vadd.f32 0.0, %v701
    %v703 = vpop.f32.mrf.mxu0
    %704 = vmatprep.mubr.f32.mxu0 0.0
    %705 = vmatmul.mubr.f32.gmra.mxu0 %v75
    %v706 = vpop.f32.mrf.mxu0
    %v707 = vadd.f32 0.0, %v706
    %v708 = vpop.f32.mrf.mxu0
    %709 = vmatprep.mubr.f32.mxu0 0.0
    %710 = vmatmul.mubr.f32.gmra.mxu0 %v78
    %v711 = vpop.f32.mrf.mxu0
    %v712 = vadd.f32 0.0, %v711
    %v713 = vpop.f32.mrf.mxu0
    %714 = vmatprep.mubr.f32.mxu0 0.0
    %715 = vmatmul.mubr.f32.gmra.mxu0 %v81
    %v716 = vpop.f32.mrf.mxu0
    %v717 = vadd.f32 0.0, %v716
    %v718 = vpop.f32.mrf.mxu0
    %719 = vdwg.mxu0
    %v720 = vmax.f32 %v702, 0.0
    %v721 = vmax.f32 %v707, 0.0
    %v722 = vmax.f32 %v712, 0.0
    %v723 = vmax.f32 %v717, 0.0
    %v724 = vmax.f32 %v585, %v720
    %v725 = vmax.f32 %v586, %v721
    %v726 = vmax.f32 %v587, %v722
    %v727 = vmax.f32 %v588, %v723
    %s728 = scalar_lea.vmem %s0, 20
    %v729 = vld [vmem:[%s728] sm:$0xf]
    %v731 = vsel %vm26, %v729, 0
    %733 = vmatprep.subr.bf16.mxu0 0
    %734 = vmatpush1.bf16.msra.mxu0 0
    %735 = vmatprep.subr.bf16.mxu0 0
    %736 = vmatpush1.bf16.msra.mxu0 0
    %737 = vmatprep.subr.bf16.mxu0 0
    %738 = vmatpush1.bf16.msra.mxu0 0
    %739 = vmatprep.subr.bf16.mxu0 0
    %740 = vmatpush1.bf16.msra.mxu0 0
    %741 = vmatprep.subr.bf16.mxu0 0
    %742 = vmatpush1.bf16.msra.mxu0 0
    %743 = vmatprep.subr.bf16.mxu0 0
    %744 = vmatpush1.bf16.msra.mxu0 0
    %745 = vmatprep.subr.bf16.mxu0 0
    %746 = vmatpush1.bf16.msra.mxu0 0
    %747 = vmatprep.subr.bf16.mxu0 0
    %748 = vmatpush1.bf16.msra.mxu0 %v731
    %749 = vmatprep.subr.bf16.mxu0 0
    %750 = vmatpush2.bf16.msra.mxu0 0
    %751 = vmatprep.subr.bf16.mxu0 0
    %752 = vmatpush2.bf16.msra.mxu0 0
    %753 = vmatprep.subr.bf16.mxu0 0
    %754 = vmatpush2.bf16.msra.mxu0 0
    %755 = vmatprep.subr.bf16.mxu0 0
    %756 = vmatpush2.bf16.msra.mxu0 0
    %757 = vmatprep.subr.bf16.mxu0 0
    %758 = vmatpush2.bf16.msra.mxu0 0
    %759 = vmatprep.subr.bf16.mxu0 0
    %760 = vmatpush2.bf16.msra.mxu0 0
    %761 = vmatprep.subr.bf16.mxu0 0
    %762 = vmatpush2.bf16.msra.mxu0 0
    %763 = vmatprep.subr.bf16.mxu0 0
    %764 = vmatpush2.bf16.msra.mxu0 0
    %765 = vmatprep.mubr.bf16.mxu0 0
    %766 = vmatmul.mubr.bf16.gmra.mxu0 %v24
    %v767 = vpop.f32.mrf.mxu0
    %v768 = vadd.f32 0.0, %v767
    %v769 = vpop.f32.mrf.mxu0
    %v770 = vpop.f32.mrf.mxu0
    %v771 = vpop.f32.mrf.mxu0
    %772 = vdwg.mxu0
    %v773 = vmax.f32 %v768, 0.0
    %774 = vmatprep.subr.mxu0 0.0
    %775 = vmatpush1.msra.mxu0 0.0
    %776 = vmatprep.subr.mxu0 0.0
    %777 = vmatpush1.msra.mxu0 0.0
    %778 = vmatprep.subr.mxu0 0.0
    %779 = vmatpush1.msra.mxu0 0.0
    %780 = vmatprep.subr.mxu0 0.0
    %781 = vmatpush1.msra.mxu0 0.0
    %782 = vmatprep.subr.mxu0 0.0
    %783 = vmatpush1.msra.mxu0 0.0
    %784 = vmatprep.subr.mxu0 0.0
    %785 = vmatpush1.msra.mxu0 0.0
    %786 = vmatprep.subr.mxu0 0.0
    %787 = vmatpush1.msra.mxu0 0.0
    %788 = vmatprep.subr.mxu0 0.0
    %789 = vmatpush1.msra.mxu0 0.0
    %790 = vmatprep.subr.mxu0 0.0
    %791 = vmatpush1.msra.mxu0 0.0
    %792 = vmatprep.subr.mxu0 0.0
    %793 = vmatpush1.msra.mxu0 0.0
    %794 = vmatprep.subr.mxu0 0.0
    %795 = vmatpush1.msra.mxu0 0.0
    %796 = vmatprep.subr.mxu0 0.0
    %797 = vmatpush1.msra.mxu0 0.0
    %798 = vmatprep.subr.mxu0 0.0
    %799 = vmatpush1.msra.mxu0 0.0
    %800 = vmatprep.subr.mxu0 0.0
    %801 = vmatpush1.msra.mxu0 0.0
    %802 = vmatprep.subr.mxu0 0.0
    %803 = vmatpush1.msra.mxu0 0.0
    %804 = vmatprep.subr.mxu0 0.0
    %805 = vmatpush1.msra.mxu0 %v773
    %806 = vmatprep.subr.mxu0 0.0
    %807 = vmatpush2.msra.mxu0 0.0
    %808 = vmatprep.subr.mxu0 0.0
    %809 = vmatpush2.msra.mxu0 0.0
    %810 = vmatprep.subr.mxu0 0.0
    %811 = vmatpush2.msra.mxu0 0.0
    %812 = vmatprep.subr.mxu0 0.0
    %813 = vmatpush2.msra.mxu0 0.0
    %814 = vmatprep.subr.mxu0 0.0
    %815 = vmatpush2.msra.mxu0 0.0
    %816 = vmatprep.subr.mxu0 0.0
    %817 = vmatpush2.msra.mxu0 0.0
    %818 = vmatprep.subr.mxu0 0.0
    %819 = vmatpush2.msra.mxu0 0.0
    %820 = vmatprep.subr.mxu0 0.0
    %821 = vmatpush2.msra.mxu0 0.0
    %822 = vmatprep.subr.mxu0 0.0
    %823 = vmatpush2.msra.mxu0 0.0
    %824 = vmatprep.subr.mxu0 0.0
    %825 = vmatpush2.msra.mxu0 0.0
    %826 = vmatprep.subr.mxu0 0.0
    %827 = vmatpush2.msra.mxu0 0.0
    %828 = vmatprep.subr.mxu0 0.0
    %829 = vmatpush2.msra.mxu0 0.0
    %830 = vmatprep.subr.mxu0 0.0
    %831 = vmatpush2.msra.mxu0 0.0
    %832 = vmatprep.subr.mxu0 0.0
    %833 = vmatpush2.msra.mxu0 0.0
    %834 = vmatprep.subr.mxu0 0.0
    %835 = vmatpush2.msra.mxu0 0.0
    %836 = vmatprep.subr.mxu0 0.0
    %837 = vmatpush2.msra.mxu0 0.0
    %838 = vmatprep.mubr.f32.mxu0 0.0
    %839 = vmatmul.mubr.f32.gmra.mxu0 %v72
    %v840 = vpop.f32.mrf.mxu0
    %v841 = vadd.f32 0.0, %v840
    %v842 = vpop.f32.mrf.mxu0
    %843 = vmatprep.mubr.f32.mxu0 0.0
    %844 = vmatmul.mubr.f32.gmra.mxu0 %v75
    %v845 = vpop.f32.mrf.mxu0
    %v846 = vadd.f32 0.0, %v845
    %v847 = vpop.f32.mrf.mxu0
    %848 = vmatprep.mubr.f32.mxu0 0.0
    %849 = vmatmul.mubr.f32.gmra.mxu0 %v78
    %v850 = vpop.f32.mrf.mxu0
    %v851 = vadd.f32 0.0, %v850
    %v852 = vpop.f32.mrf.mxu0
    %853 = vmatprep.mubr.f32.mxu0 0.0
    %854 = vmatmul.mubr.f32.gmra.mxu0 %v81
    %v855 = vpop.f32.mrf.mxu0
    %v856 = vadd.f32 0.0, %v855
    %v857 = vpop.f32.mrf.mxu0
    %858 = vdwg.mxu0
    %v859 = vmax.f32 %v841, 0.0
    %v860 = vmax.f32 %v846, 0.0
    %v861 = vmax.f32 %v851, 0.0
    %v862 = vmax.f32 %v856, 0.0
    %v863 = vmax.f32 %v724, %v859
    %v864 = vmax.f32 %v725, %v860
    %v865 = vmax.f32 %v726, %v861
    %v866 = vmax.f32 %v727, %v862
    %s867 = scalar_lea.vmem %s0, 24
    %v868 = vld [vmem:[%s867] sm:$0xf]
    %v870 = vsel %vm26, %v868, 0
    %872 = vmatprep.subr.bf16.mxu0 0
    %873 = vmatpush1.bf16.msra.mxu0 0
    %874 = vmatprep.subr.bf16.mxu0 0
    %875 = vmatpush1.bf16.msra.mxu0 0
    %876 = vmatprep.subr.bf16.mxu0 0
    %877 = vmatpush1.bf16.msra.mxu0 0
    %878 = vmatprep.subr.bf16.mxu0 0
    %879 = vmatpush1.bf16.msra.mxu0 0
    %880 = vmatprep.subr.bf16.mxu0 0
    %881 = vmatpush1.bf16.msra.mxu0 0
    %882 = vmatprep.subr.bf16.mxu0 0
    %883 = vmatpush1.bf16.msra.mxu0 0
    %884 = vmatprep.subr.bf16.mxu0 0
    %885 = vmatpush1.bf16.msra.mxu0 0
    %886 = vmatprep.subr.bf16.mxu0 0
    %887 = vmatpush1.bf16.msra.mxu0 %v870
    %888 = vmatprep.subr.bf16.mxu0 0
    %889 = vmatpush2.bf16.msra.mxu0 0
    %890 = vmatprep.subr.bf16.mxu0 0
    %891 = vmatpush2.bf16.msra.mxu0 0
    %892 = vmatprep.subr.bf16.mxu0 0
    %893 = vmatpush2.bf16.msra.mxu0 0
    %894 = vmatprep.subr.bf16.mxu0 0
    %895 = vmatpush2.bf16.msra.mxu0 0
    %896 = vmatprep.subr.bf16.mxu0 0
    %897 = vmatpush2.bf16.msra.mxu0 0
    %898 = vmatprep.subr.bf16.mxu0 0
    %899 = vmatpush2.bf16.msra.mxu0 0
    %900 = vmatprep.subr.bf16.mxu0 0
    %901 = vmatpush2.bf16.msra.mxu0 0
    %902 = vmatprep.subr.bf16.mxu0 0
    %903 = vmatpush2.bf16.msra.mxu0 0
    %904 = vmatprep.mubr.bf16.mxu0 0
    %905 = vmatmul.mubr.bf16.gmra.mxu0 %v24
    %v906 = vpop.f32.mrf.mxu0
    %v907 = vadd.f32 0.0, %v906
    %v908 = vpop.f32.mrf.mxu0
    %v909 = vpop.f32.mrf.mxu0
    %v910 = vpop.f32.mrf.mxu0
    %911 = vdwg.mxu0
    %v912 = vmax.f32 %v907, 0.0
    %913 = vmatprep.subr.mxu0 0.0
    %914 = vmatpush1.msra.mxu0 0.0
    %915 = vmatprep.subr.mxu0 0.0
    %916 = vmatpush1.msra.mxu0 0.0
    %917 = vmatprep.subr.mxu0 0.0
    %918 = vmatpush1.msra.mxu0 0.0
    %919 = vmatprep.subr.mxu0 0.0
    %920 = vmatpush1.msra.mxu0 0.0
    %921 = vmatprep.subr.mxu0 0.0
    %922 = vmatpush1.msra.mxu0 0.0
    %923 = vmatprep.subr.mxu0 0.0
    %924 = vmatpush1.msra.mxu0 0.0
    %925 = vmatprep.subr.mxu0 0.0
    %926 = vmatpush1.msra.mxu0 0.0
    %927 = vmatprep.subr.mxu0 0.0
    %928 = vmatpush1.msra.mxu0 0.0
    %929 = vmatprep.subr.mxu0 0.0
    %930 = vmatpush1.msra.mxu0 0.0
    %931 = vmatprep.subr.mxu0 0.0
    %932 = vmatpush1.msra.mxu0 0.0
    %933 = vmatprep.subr.mxu0 0.0
    %934 = vmatpush1.msra.mxu0 0.0
    %935 = vmatprep.subr.mxu0 0.0
    %936 = vmatpush1.msra.mxu0 0.0
    %937 = vmatprep.subr.mxu0 0.0
    %938 = vmatpush1.msra.mxu0 0.0
    %939 = vmatprep.subr.mxu0 0.0
    %940 = vmatpush1.msra.mxu0 0.0
    %941 = vmatprep.subr.mxu0 0.0
    %942 = vmatpush1.msra.mxu0 0.0
    %943 = vmatprep.subr.mxu0 0.0
    %944 = vmatpush1.msra.mxu0 %v912
    %945 = vmatprep.subr.mxu0 0.0
    %946 = vmatpush2.msra.mxu0 0.0
    %947 = vmatprep.subr.mxu0 0.0
    %948 = vmatpush2.msra.mxu0 0.0
    %949 = vmatprep.subr.mxu0 0.0
    %950 = vmatpush2.msra.mxu0 0.0
    %951 = vmatprep.subr.mxu0 0.0
    %952 = vmatpush2.msra.mxu0 0.0
    %953 = vmatprep.subr.mxu0 0.0
    %954 = vmatpush2.msra.mxu0 0.0
    %955 = vmatprep.subr.mxu0 0.0
    %956 = vmatpush2.msra.mxu0 0.0
    %957 = vmatprep.subr.mxu0 0.0
    %958 = vmatpush2.msra.mxu0 0.0
    %959 = vmatprep.subr.mxu0 0.0
    %960 = vmatpush2.msra.mxu0 0.0
    %961 = vmatprep.subr.mxu0 0.0
    %962 = vmatpush2.msra.mxu0 0.0
    %963 = vmatprep.subr.mxu0 0.0
    %964 = vmatpush2.msra.mxu0 0.0
    %965 = vmatprep.subr.mxu0 0.0
    %966 = vmatpush2.msra.mxu0 0.0
    %967 = vmatprep.subr.mxu0 0.0
    %968 = vmatpush2.msra.mxu0 0.0
    %969 = vmatprep.subr.mxu0 0.0
    %970 = vmatpush2.msra.mxu0 0.0
    %971 = vmatprep.subr.mxu0 0.0
    %972 = vmatpush2.msra.mxu0 0.0
    %973 = vmatprep.subr.mxu0 0.0
    %974 = vmatpush2.msra.mxu0 0.0
    %975 = vmatprep.subr.mxu0 0.0
    %976 = vmatpush2.msra.mxu0 0.0
    %977 = vmatprep.mubr.f32.mxu0 0.0
    %978 = vmatmul.mubr.f32.gmra.mxu0 %v72
    %v979 = vpop.f32.mrf.mxu0
    %v980 = vadd.f32 0.0, %v979
    %v981 = vpop.f32.mrf.mxu0
    %982 = vmatprep.mubr.f32.mxu0 0.0
    %983 = vmatmul.mubr.f32.gmra.mxu0 %v75
    %v984 = vpop.f32.mrf.mxu0
    %v985 = vadd.f32 0.0, %v984
    %v986 = vpop.f32.mrf.mxu0
    %987 = vmatprep.mubr.f32.mxu0 0.0
    %988 = vmatmul.mubr.f32.gmra.mxu0 %v78
    %v989 = vpop.f32.mrf.mxu0
    %v990 = vadd.f32 0.0, %v989
    %v991 = vpop.f32.mrf.mxu0
    %992 = vmatprep.mubr.f32.mxu0 0.0
    %993 = vmatmul.mubr.f32.gmra.mxu0 %v81
    %v994 = vpop.f32.mrf.mxu0
    %v995 = vadd.f32 0.0, %v994
    %v996 = vpop.f32.mrf.mxu0
    %997 = vdwg.mxu0
    %v998 = vmax.f32 %v980, 0.0
    %v999 = vmax.f32 %v985, 0.0
    %v1000 = vmax.f32 %v990, 0.0
    %v1001 = vmax.f32 %v995, 0.0
    %v1002 = vmax.f32 %v863, %v998
    %v1003 = vmax.f32 %v864, %v999
    %v1004 = vmax.f32 %v865, %v1000
    %v1005 = vmax.f32 %v866, %v1001
    %s1006 = scalar_lea.vmem %s0, 28
    %v1007 = vld [vmem:[%s1006] sm:$0xf]
    %v1009 = vsel %vm26, %v1007, 0
    %1011 = vmatprep.subr.bf16.mxu0 0
    %1012 = vmatpush1.bf16.msra.mxu0 0
    %1013 = vmatprep.subr.bf16.mxu0 0
    %1014 = vmatpush1.bf16.msra.mxu0 0
    %1015 = vmatprep.subr.bf16.mxu0 0
    %1016 = vmatpush1.bf16.msra.mxu0 0
    %1017 = vmatprep.subr.bf16.mxu0 0
    %1018 = vmatpush1.bf16.msra.mxu0 0
    %1019 = vmatprep.subr.bf16.mxu0 0
    %1020 = vmatpush1.bf16.msra.mxu0 0
    %1021 = vmatprep.subr.bf16.mxu0 0
    %1022 = vmatpush1.bf16.msra.mxu0 0
    %1023 = vmatprep.subr.bf16.mxu0 0
    %1024 = vmatpush1.bf16.msra.mxu0 0
    %1025 = vmatprep.subr.bf16.mxu0 0
    %1026 = vmatpush1.bf16.msra.mxu0 %v1009
    %1027 = vmatprep.subr.bf16.mxu0 0
    %1028 = vmatpush2.bf16.msra.mxu0 0
    %1029 = vmatprep.subr.bf16.mxu0 0
    %1030 = vmatpush2.bf16.msra.mxu0 0
    %1031 = vmatprep.subr.bf16.mxu0 0
    %1032 = vmatpush2.bf16.msra.mxu0 0
    %1033 = vmatprep.subr.bf16.mxu0 0
    %1034 = vmatpush2.bf16.msra.mxu0 0
    %1035 = vmatprep.subr.bf16.mxu0 0
    %1036 = vmatpush2.bf16.msra.mxu0 0
    %1037 = vmatprep.subr.bf16.mxu0 0
    %1038 = vmatpush2.bf16.msra.mxu0 0
    %1039 = vmatprep.subr.bf16.mxu0 0
    %1040 = vmatpush2.bf16.msra.mxu0 0
    %1041 = vmatprep.subr.bf16.mxu0 0
    %1042 = vmatpush2.bf16.msra.mxu0 0
    %1043 = vmatprep.mubr.bf16.mxu0 0
    %1044 = vmatmul.mubr.bf16.gmra.mxu0 %v24
    %v1045 = vpop.f32.mrf.mxu0
    %v1046 = vadd.f32 0.0, %v1045
    %v1047 = vpop.f32.mrf.mxu0
    %v1048 = vpop.f32.mrf.mxu0
    %v1049 = vpop.f32.mrf.mxu0
    %1050 = vdwg.mxu0
    %v1051 = vmax.f32 %v1046, 0.0
    %1052 = vmatprep.subr.mxu0 0.0
    %1053 = vmatpush1.msra.mxu0 0.0
    %1054 = vmatprep.subr.mxu0 0.0
    %1055 = vmatpush1.msra.mxu0 0.0
    %1056 = vmatprep.subr.mxu0 0.0
    %1057 = vmatpush1.msra.mxu0 0.0
    %1058 = vmatprep.subr.mxu0 0.0
    %1059 = vmatpush1.msra.mxu0 0.0
    %1060 = vmatprep.subr.mxu0 0.0
    %1061 = vmatpush1.msra.mxu0 0.0
    %1062 = vmatprep.subr.mxu0 0.0
    %1063 = vmatpush1.msra.mxu0 0.0
    %1064 = vmatprep.subr.mxu0 0.0
    %1065 = vmatpush1.msra.mxu0 0.0
    %1066 = vmatprep.subr.mxu0 0.0
    %1067 = vmatpush1.msra.mxu0 0.0
    %1068 = vmatprep.subr.mxu0 0.0
    %1069 = vmatpush1.msra.mxu0 0.0
    %1070 = vmatprep.subr.mxu0 0.0
    %1071 = vmatpush1.msra.mxu0 0.0
    %1072 = vmatprep.subr.mxu0 0.0
    %1073 = vmatpush1.msra.mxu0 0.0
    %1074 = vmatprep.subr.mxu0 0.0
    %1075 = vmatpush1.msra.mxu0 0.0
    %1076 = vmatprep.subr.mxu0 0.0
    %1077 = vmatpush1.msra.mxu0 0.0
    %1078 = vmatprep.subr.mxu0 0.0
    %1079 = vmatpush1.msra.mxu0 0.0
    %1080 = vmatprep.subr.mxu0 0.0
    %1081 = vmatpush1.msra.mxu0 0.0
    %1082 = vmatprep.subr.mxu0 0.0
    %1083 = vmatpush1.msra.mxu0 %v1051
    %1084 = vmatprep.subr.mxu0 0.0
    %1085 = vmatpush2.msra.mxu0 0.0
    %1086 = vmatprep.subr.mxu0 0.0
    %1087 = vmatpush2.msra.mxu0 0.0
    %1088 = vmatprep.subr.mxu0 0.0
    %1089 = vmatpush2.msra.mxu0 0.0
    %1090 = vmatprep.subr.mxu0 0.0
    %1091 = vmatpush2.msra.mxu0 0.0
    %1092 = vmatprep.subr.mxu0 0.0
    %1093 = vmatpush2.msra.mxu0 0.0
    %1094 = vmatprep.subr.mxu0 0.0
    %1095 = vmatpush2.msra.mxu0 0.0
    %1096 = vmatprep.subr.mxu0 0.0
    %1097 = vmatpush2.msra.mxu0 0.0
    %1098 = vmatprep.subr.mxu0 0.0
    %1099 = vmatpush2.msra.mxu0 0.0
    %1100 = vmatprep.subr.mxu0 0.0
    %1101 = vmatpush2.msra.mxu0 0.0
    %1102 = vmatprep.subr.mxu0 0.0
    %1103 = vmatpush2.msra.mxu0 0.0
    %1104 = vmatprep.subr.mxu0 0.0
    %1105 = vmatpush2.msra.mxu0 0.0
    %1106 = vmatprep.subr.mxu0 0.0
    %1107 = vmatpush2.msra.mxu0 0.0
    %1108 = vmatprep.subr.mxu0 0.0
    %1109 = vmatpush2.msra.mxu0 0.0
    %1110 = vmatprep.subr.mxu0 0.0
    %1111 = vmatpush2.msra.mxu0 0.0
    %1112 = vmatprep.subr.mxu0 0.0
    %1113 = vmatpush2.msra.mxu0 0.0
    %1114 = vmatprep.subr.mxu0 0.0
    %1115 = vmatpush2.msra.mxu0 0.0
    %1116 = vmatprep.mubr.f32.mxu0 0.0
    %1117 = vmatmul.mubr.f32.gmra.mxu0 %v72
    %v1118 = vpop.f32.mrf.mxu0
    %v1119 = vadd.f32 0.0, %v1118
    %v1120 = vpop.f32.mrf.mxu0
    %1121 = vmatprep.mubr.f32.mxu0 0.0
    %1122 = vmatmul.mubr.f32.gmra.mxu0 %v75
    %v1123 = vpop.f32.mrf.mxu0
    %v1124 = vadd.f32 0.0, %v1123
    %v1125 = vpop.f32.mrf.mxu0
    %1126 = vmatprep.mubr.f32.mxu0 0.0
    %1127 = vmatmul.mubr.f32.gmra.mxu0 %v78
    %v1128 = vpop.f32.mrf.mxu0
    %v1129 = vadd.f32 0.0, %v1128
    %v1130 = vpop.f32.mrf.mxu0
    %1131 = vmatprep.mubr.f32.mxu0 0.0
    %1132 = vmatmul.mubr.f32.gmra.mxu0 %v81
    %v1133 = vpop.f32.mrf.mxu0
    %v1134 = vadd.f32 0.0, %v1133
    %v1135 = vpop.f32.mrf.mxu0
    %1136 = vdwg.mxu0
    %v1137 = vmax.f32 %v1119, 0.0
    %v1138 = vmax.f32 %v1124, 0.0
    %v1139 = vmax.f32 %v1129, 0.0
    %v1140 = vmax.f32 %v1134, 0.0
    %v1141 = vmax.f32 %v1002, %v1137
    %v1142 = vmax.f32 %v1003, %v1138
    %v1143 = vmax.f32 %v1004, %v1139
    %v1144 = vmax.f32 %v1005, %v1140
    %1145 = vst [vmem:[#allocation2] sm:$0xff] %v1141
    %1146 = vst [vmem:[#allocation2 + $0x8] sm:$0xff] %v1142
    %1147 = vst [vmem:[#allocation2 + $0x10] sm:$0xff] %v1143
    %1148 = vst [vmem:[#allocation2 + $0x18] sm:$0xff] %v1144
    // Predicated region
    $region14: #{tpu_custom_call.1} parent=1 // pred_check
      _
    $region15: #{tpu_custom_call.1} parent=1 // pred_check_branch
      %1150 = sbr.rel (0) target = $region17
    $region16: #{tpu_custom_call.1} parent=1 // pred_region
      %s1152 = ssub.s32 512, 512
      %1153 = vsyncadd [#allocation3], %s1152
      %s1154 = sshll.u32 [#allocation2], 4
      %s1155 = int_to_ptr.vmem [resolvable:$true] %s1154
      %1160 = dma.vmem_to_hbm [thread:$0]  %s1155, 512, %s3, [#allocation3], 128, 128, 8
    $region17: #{tpu_custom_call.1} parent=1 // pred_fallthru
      _
    // Predicated region
    $region18: #{tpu_custom_call.1} parent=1 // pred_check
      _
    $region19: #{tpu_custom_call.1} parent=1 // pred_check_branch
      %1162 = sbr.rel (0) target = $region21
    $region20: #{tpu_custom_call.1} parent=1 // pred_region
      %1163 = dma.done [#allocation3], 512
    $region21: #{tpu_custom_call.1} parent=1 // pred_fallthru
      _
    %1164 = vsyncpa [#allocation3], 1

</llo_original>
